<compile_context>
chip_gen: v5e
topology: v5e:2x2
jax: 0.10.0
libtpu: 0.0.40
codegen_flags: <defaults>
</compile_context>

<pallas_src>
import jax
import jax.numpy as jnp
from jax.experimental import pallas as pl
from jax.experimental.pallas import tpu as pltpu


def _round_up(n, m):
    return ((n + m - 1) // m) * m


def _ff_classifier_kernel(x_ref, len_ref, t_ref, b1_ref, w2_ref, b2_ref, o_ref):
    ids = x_ref[...]                                   # (TB, S) int32
    TB, S = ids.shape
    V = t_ref.shape[0]

    # --- token-count histogram, accumulated in 2-D (no (TB,S,V) intermediate) ---
    lane_iota = jax.lax.broadcasted_iota(jnp.int32, (TB, V), 1)      # (TB, V)
    counts = (ids[:, 0:1] == lane_iota).astype(jnp.float32)
    for s in range(1, S):                              # S is small & static: unroll
        counts = counts + (ids[:, s:s + 1] == lane_iota).astype(jnp.float32)
    # counts <= S, exact in bf16 while S <= 256 (S = 8 here). Row 0 of the folded
    # table is zeroed in the wrapper, so pad tokens (id == 0) contribute nothing.

    # --- single MXU matmul against the folded table (emb @ w1), f32 accumulate ---
    hw = jnp.dot(counts.astype(jnp.bfloat16), t_ref[...],
                 preferred_element_type=jnp.float32)   # (TB, H_pad)

    # --- masked mean over sequence: EUP reciprocal of clamp(len, 1) --------------
    inv_len = pl.reciprocal(jnp.maximum(len_ref[...], 1.0), approx=True)  # (TB, 1)

    # --- fc1 epilogue + ReLU ------------------------------------------------------
    h = jnp.maximum(hw * inv_len + b1_ref[...], 0.0)   # (TB, H_pad)

    # Dropout(0.5): eval-mode identity (no-op at inference).

    # --- fc2 (num_classes == 1): VPU multiply + lane reduction, lane-dense store --
    logits = jnp.sum(h * w2_ref[...], axis=-1)         # (TB,)
    o_ref[...] = (logits[None, :] + b2_ref[...])[None]  # (1, 1, TB)


def ff_classifier_forward(x, lengths, emb, w1, b1, w2, b2, *, batch_tile=256):
    """x: (B,S) int32 token ids, lengths: (B,). Returns (B,) float32 logits."""
    B, S = x.shape
    V, E = emb.shape
    H = w1.shape[1]

    # --- batch tiling: multiple of 128, prefer >= 2 grid steps (v7x dual-TC) -----
    B128 = _round_up(B, 128)
    TB = min(batch_tile, B128)
    if pl.cdiv(B128, TB) < 2 and B128 >= 256:
        TB = _round_up(pl.cdiv(B128, 2), 128)
    num_tiles = pl.cdiv(B, TB)
    B_pad = num_tiles * TB

    H_pad = _round_up(H, 128)

    # --- fold fc1 into the embedding table (mean-pool and fc1 are linear) --------
    emb_w1 = emb.astype(jnp.float32) @ w1.astype(jnp.float32)        # (V, H) f32
    table = jnp.zeros((V, H_pad), jnp.float32).at[:, :H].set(emb_w1)
    table = table.at[0, :].set(0.0)           # padding_idx=0 contributes nothing
    table = table.astype(jnp.bfloat16)

    b1_p = jnp.zeros((1, H_pad), jnp.float32).at[0, :H].set(b1.astype(jnp.float32))
    w2_row = jnp.zeros((1, H_pad), jnp.float32).at[0, :H].set(
        w2[:, 0].astype(jnp.float32))
    b2_2d = b2.reshape(1, 1).astype(jnp.float32)

    # Pad batch up to the tile size (pad rows are all pad tokens, sliced off later).
    x_pad = jnp.zeros((B_pad, S), jnp.int32).at[:B, :].set(x.astype(jnp.int32))
    lens_pad = jnp.ones((B_pad, 1), jnp.float32).at[:B, 0].set(
        lengths.astype(jnp.float32))

    out = pl.pallas_call(
        _ff_classifier_kernel,
        out_shape=jax.ShapeDtypeStruct((num_tiles, 1, TB), jnp.float32),
        grid=(num_tiles,),
        in_specs=[
            pl.BlockSpec((TB, S), lambda i: (i, 0)),          # x        (tiled)
            pl.BlockSpec((TB, 1), lambda i: (i, 0)),          # lengths  (tiled)
            pl.BlockSpec((V, H_pad), lambda i: (0, 0)),       # folded emb@w1 (bf16)
            pl.BlockSpec((1, H_pad), lambda i: (0, 0)),       # b1
            pl.BlockSpec((1, H_pad), lambda i: (0, 0)),       # w2 row
            pl.BlockSpec((1, 1), lambda i: (0, 0)),           # b2
        ],
        out_specs=pl.BlockSpec((1, 1, TB), lambda i: (i, 0, 0)),  # lane-dense
        compiler_params=pltpu.CompilerParams(
            dimension_semantics=("parallel",),
            vmem_limit_bytes=32 * 1024 * 1024),
    )(x_pad, lens_pad, table, b1_p, w2_row, b2_2d)

    # (num_tiles, 1, TB) -> (B,) : matches torch `.squeeze()` for num_classes=1.
    return out.reshape(B_pad)[:B]


def _ref_forward(x, lengths, emb, w1, b1, w2, b2):
    """Pure-JAX f32 reference mirroring the PyTorch forward (eval mode)."""
    embedded = emb[x]                                        # (B, S, E)
    mask = (x != 0)[..., None].astype(jnp.float32)
    summed = jnp.sum(embedded * mask, axis=1)                # (B, E)
    lens = jnp.maximum(lengths.astype(jnp.float32), 1.0)[:, None]
    averaged = summed / lens
    h = jnp.maximum(averaged @ w1 + b1, 0.0)
    out = h @ w2 + b2
    return jnp.squeeze(out)


if __name__ == "__main__":
    # Small shapes consistent with the module.
    VOCAB, EMBED, HIDDEN, NUM_CLASSES = 32, 16, 32, 1
    B, S = 2, 8

    key = jax.random.PRNGKey(0)
    k_emb, k_w1, k_b1, k_w2, k_b2, k_x = jax.random.split(key, 6)

    # Deterministic parameter init (synthetic; mimics nn.Embedding / nn.Linear).
    emb = jax.random.normal(k_emb, (VOCAB, EMBED), dtype=jnp.float32)
    emb = emb.at[0].set(0.0)                                  # padding_idx=0
    lim1 = 1.0 / (EMBED ** 0.5)
    w1 = jax.random.uniform(k_w1, (EMBED, HIDDEN), minval=-lim1, maxval=lim1,
                            dtype=jnp.float32)
    b1 = jax.random.uniform(k_b1, (HIDDEN,), minval=-lim1, maxval=lim1,
                            dtype=jnp.float32)
    lim2 = 1.0 / (HIDDEN ** 0.5)
    w2 = jax.random.uniform(k_w2, (HIDDEN, NUM_CLASSES), minval=-lim2,
                            maxval=lim2, dtype=jnp.float32)
    b2 = jax.random.uniform(k_b2, (NUM_CLASSES,), minval=-lim2, maxval=lim2,
                            dtype=jnp.float32)

    # Token ids with padding: lengths[i] real tokens then zeros.
    lengths = jnp.array([8, 5], dtype=jnp.int32)
    x_full = jax.random.randint(k_x, (B, S), minval=1, maxval=VOCAB,
                                dtype=jnp.int32)
    pos = jnp.arange(S)[None, :]
    x = jnp.where(pos < lengths[:, None], x_full, 0)

    out = ff_classifier_forward(x, lengths, emb, w1, b1, w2, b2)
    out = jax.block_until_ready(out)

    ref = _ref_forward(x, lengths, emb, w1, b1, w2, b2)
    assert out.shape == ref.shape == (B,)
    # bf16 folded-table matmul + approx reciprocal -> bf16-level tolerance.
    assert jnp.allclose(out, ref, atol=2e-2, rtol=2e-2), (out, ref)

    # TODO(synk): training-mode Dropout(0.5) and an HBM row-gather path for large
    # vocabularies (memory_space=pl.ANY + scalar-prefetched ids) are not implemented.
    print("KERNEL_OK")
</pallas_src>

<mosaic_0001>
module attributes {stable_mosaic.version = 11 : i64} {
  func.func @_ff_classifier_kernel(%arg0: i32, %arg1: memref<128x8xi32, #tpu.memory_space<vmem>>, %arg2: memref<128x1xf32, #tpu.memory_space<vmem>>, %arg3: memref<32x128xbf16, #tpu.memory_space<vmem>>, %arg4: memref<1x128xf32, #tpu.memory_space<vmem>>, %arg5: memref<1x128xf32, #tpu.memory_space<vmem>>, %arg6: memref<1x1xf32, #tpu.memory_space<vmem>>, %arg7: memref<1x1x128xf32, #tpu.memory_space<vmem>>) attributes {dimension_semantics = [#tpu.dimension_semantics<parallel>], iteration_bounds = array<i64: 1>, scalar_prefetch = 0 : i64, scratch_operands = 0 : i64, tpu.core_type = #tpu.core_type<tc>, window_params = [{transform_indices = @transform_0, window_bounds = array<i64: 128, 8>}, {transform_indices = @transform_1, window_bounds = array<i64: 128, 1>}, {pipeline_mode = #tpu.pipeline_mode<synchronous>, transform_indices = @transform_2, window_bounds = array<i64: 32, 128>}, {pipeline_mode = #tpu.pipeline_mode<synchronous>, transform_indices = @transform_3, window_bounds = array<i64: 1, 128>}, {pipeline_mode = #tpu.pipeline_mode<synchronous>, transform_indices = @transform_4, window_bounds = array<i64: 1, 128>}, {pipeline_mode = #tpu.pipeline_mode<synchronous>, transform_indices = @transform_5, window_bounds = array<i64: 1, 1>}, {transform_indices = @transform_6, window_bounds = array<i64: 1, 1, 128>}]} {
    %c0 = arith.constant 0 : index
    %c0_0 = arith.constant 0 : index
    %0 = vector.load %arg1[%c0, %c0_0] : memref<128x8xi32, #tpu.memory_space<vmem>>, vector<128x8xi32>
    %1 = tpu.iota {dimensions = array<i32: 1>} : vector<128x32xi32>
    %2 = vector.extract_strided_slice %0 {offsets = [0, 0], sizes = [128, 1], strides = [1, 1]} : vector<128x8xi32> to vector<128x1xi32>
    %3 = vector.broadcast %2 : vector<128x1xi32> to vector<128x32xi32>
    %4 = arith.cmpi eq, %3, %1 : vector<128x32xi32>
    %5 = arith.extui %4 : vector<128x32xi1> to vector<128x32xi32>
    %6 = arith.sitofp %5 : vector<128x32xi32> to vector<128x32xf32>
    %7 = vector.extract_strided_slice %0 {offsets = [0, 1], sizes = [128, 1], strides = [1, 1]} : vector<128x8xi32> to vector<128x1xi32>
    %8 = vector.broadcast %7 : vector<128x1xi32> to vector<128x32xi32>
    %9 = arith.cmpi eq, %8, %1 : vector<128x32xi32>
    %10 = arith.extui %9 : vector<128x32xi1> to vector<128x32xi32>
    %11 = arith.sitofp %10 : vector<128x32xi32> to vector<128x32xf32>
    %12 = arith.addf %6, %11 : vector<128x32xf32>
    %13 = vector.extract_strided_slice %0 {offsets = [0, 2], sizes = [128, 1], strides = [1, 1]} : vector<128x8xi32> to vector<128x1xi32>
    %14 = vector.broadcast %13 : vector<128x1xi32> to vector<128x32xi32>
    %15 = arith.cmpi eq, %14, %1 : vector<128x32xi32>
    %16 = arith.extui %15 : vector<128x32xi1> to vector<128x32xi32>
    %17 = arith.sitofp %16 : vector<128x32xi32> to vector<128x32xf32>
    %18 = arith.addf %12, %17 : vector<128x32xf32>
    %19 = vector.extract_strided_slice %0 {offsets = [0, 3], sizes = [128, 1], strides = [1, 1]} : vector<128x8xi32> to vector<128x1xi32>
    %20 = vector.broadcast %19 : vector<128x1xi32> to vector<128x32xi32>
    %21 = arith.cmpi eq, %20, %1 : vector<128x32xi32>
    %22 = arith.extui %21 : vector<128x32xi1> to vector<128x32xi32>
    %23 = arith.sitofp %22 : vector<128x32xi32> to vector<128x32xf32>
    %24 = arith.addf %18, %23 : vector<128x32xf32>
    %25 = vector.extract_strided_slice %0 {offsets = [0, 4], sizes = [128, 1], strides = [1, 1]} : vector<128x8xi32> to vector<128x1xi32>
    %26 = vector.broadcast %25 : vector<128x1xi32> to vector<128x32xi32>
    %27 = arith.cmpi eq, %26, %1 : vector<128x32xi32>
    %28 = arith.extui %27 : vector<128x32xi1> to vector<128x32xi32>
    %29 = arith.sitofp %28 : vector<128x32xi32> to vector<128x32xf32>
    %30 = arith.addf %24, %29 : vector<128x32xf32>
    %31 = vector.extract_strided_slice %0 {offsets = [0, 5], sizes = [128, 1], strides = [1, 1]} : vector<128x8xi32> to vector<128x1xi32>
    %32 = vector.broadcast %31 : vector<128x1xi32> to vector<128x32xi32>
    %33 = arith.cmpi eq, %32, %1 : vector<128x32xi32>
    %34 = arith.extui %33 : vector<128x32xi1> to vector<128x32xi32>
    %35 = arith.sitofp %34 : vector<128x32xi32> to vector<128x32xf32>
    %36 = arith.addf %30, %35 : vector<128x32xf32>
    %37 = vector.extract_strided_slice %0 {offsets = [0, 6], sizes = [128, 1], strides = [1, 1]} : vector<128x8xi32> to vector<128x1xi32>
    %38 = vector.broadcast %37 : vector<128x1xi32> to vector<128x32xi32>
    %39 = arith.cmpi eq, %38, %1 : vector<128x32xi32>
    %40 = arith.extui %39 : vector<128x32xi1> to vector<128x32xi32>
    %41 = arith.sitofp %40 : vector<128x32xi32> to vector<128x32xf32>
    %42 = arith.addf %36, %41 : vector<128x32xf32>
    %43 = vector.extract_strided_slice %0 {offsets = [0, 7], sizes = [128, 1], strides = [1, 1]} : vector<128x8xi32> to vector<128x1xi32>
    %44 = vector.broadcast %43 : vector<128x1xi32> to vector<128x32xi32>
    %45 = arith.cmpi eq, %44, %1 : vector<128x32xi32>
    %46 = arith.extui %45 : vector<128x32xi1> to vector<128x32xi32>
    %47 = arith.sitofp %46 : vector<128x32xi32> to vector<128x32xf32>
    %48 = arith.addf %42, %47 : vector<128x32xf32>
    %49 = arith.truncf %48 : vector<128x32xf32> to vector<128x32xbf16>
    %c0_1 = arith.constant 0 : index
    %c0_2 = arith.constant 0 : index
    %50 = vector.load %arg3[%c0_1, %c0_2] : memref<32x128xbf16, #tpu.memory_space<vmem>>, vector<32x128xbf16>
    %cst = arith.constant dense<0.000000e+00> : vector<128x128xf32>
    %51 = tpu.matmul %49, %50, %cst {dimension_numbers = #tpu.dot_dimension_numbers<[1], [0], [0], [1], [0, 0, 1, 1], [], []>} : vector<128x32xbf16>, vector<32x128xbf16>, vector<128x128xf32> -> vector<128x128xf32>
    %c0_3 = arith.constant 0 : index
    %c0_4 = arith.constant 0 : index
    %52 = vector.load %arg2[%c0_3, %c0_4] : memref<128x1xf32, #tpu.memory_space<vmem>>, vector<128x1xf32>
    %cst_5 = arith.constant 1.000000e+00 : f32
    %53 = vector.broadcast %cst_5 : f32 to vector<128x1xf32>
    %54 = arith.maximumf %52, %53 : vector<128x1xf32>
    %55 = tpu.reciprocal %54 {approx = true} : vector<128x1xf32> -> vector<128x1xf32>
    %56 = vector.broadcast %55 : vector<128x1xf32> to vector<128x128xf32>
    %57 = arith.mulf %51, %56 : vector<128x128xf32>
    %c0_6 = arith.constant 0 : index
    %c0_7 = arith.constant 0 : index
    %58 = vector.load %arg4[%c0_6, %c0_7] : memref<1x128xf32, #tpu.memory_space<vmem>>, vector<1x128xf32>
    %59 = vector.broadcast %58 : vector<1x128xf32> to vector<128x128xf32>
    %60 = arith.addf %57, %59 : vector<128x128xf32>
    %cst_8 = arith.constant 0.000000e+00 : f32
    %61 = vector.broadcast %cst_8 : f32 to vector<128x128xf32>
    %62 = arith.maximumf %60, %61 : vector<128x128xf32>
    %c0_9 = arith.constant 0 : index
    %c0_10 = arith.constant 0 : index
    %63 = vector.load %arg5[%c0_9, %c0_10] : memref<1x128xf32, #tpu.memory_space<vmem>>, vector<1x128xf32>
    %64 = vector.broadcast %63 : vector<1x128xf32> to vector<128x128xf32>
    %65 = arith.mulf %62, %64 : vector<128x128xf32>
    %cst_11 = arith.constant dense<0.000000e+00> : vector<128xf32>
    %66 = vector.multi_reduction <add>, %65, %cst_11 [1] : vector<128x128xf32> to vector<128xf32>
    %67 = vector.shape_cast %66 : vector<128xf32> to vector<1x128xf32>
    %c0_12 = arith.constant 0 : index
    %c0_13 = arith.constant 0 : index
    %68 = vector.load %arg6[%c0_12, %c0_13] : memref<1x1xf32, #tpu.memory_space<vmem>>, vector<1x1xf32>
    %69 = vector.broadcast %68 : vector<1x1xf32> to vector<1x128xf32>
    %70 = arith.addf %67, %69 : vector<1x128xf32>
    %71 = vector.shape_cast %70 : vector<1x128xf32> to vector<1x1x128xf32>
    %c0_14 = arith.constant 0 : index
    %c0_15 = arith.constant 0 : index
    %c0_16 = arith.constant 0 : index
    %72 = vector.load %arg7[%c0_14, %c0_15, %c0_16] : memref<1x1x128xf32, #tpu.memory_space<vmem>>, vector<1x1x128xf32>
    tpu.vector_store %arg7[%c0_14, %c0_15, %c0_16], %71 {strides = array<i32>} : memref<1x1x128xf32, #tpu.memory_space<vmem>>, vector<1x1x128xf32>,
    return
  }
  func.func @transform_0(%arg0: i32) -> (i32, i32) {
    %c0_i32 = arith.constant 0 : i32
    %c0_i32_0 = arith.constant 0 : i32
    return %arg0, %c0_i32 : i32, i32
  }
  func.func @transform_1(%arg0: i32) -> (i32, i32) {
    %c0_i32 = arith.constant 0 : i32
    %c0_i32_0 = arith.constant 0 : i32
    return %arg0, %c0_i32 : i32, i32
  }
  func.func @transform_2(%arg0: i32) -> (i32, i32) {
    %c0_i32 = arith.constant 0 : i32
    %c0_i32_0 = arith.constant 0 : i32
    %c0_i32_1 = arith.constant 0 : i32
    return %c0_i32, %c0_i32_0 : i32, i32
  }
  func.func @transform_3(%arg0: i32) -> (i32, i32) {
    %c0_i32 = arith.constant 0 : i32
    %c0_i32_0 = arith.constant 0 : i32
    %c0_i32_1 = arith.constant 0 : i32
    return %c0_i32, %c0_i32_0 : i32, i32
  }
  func.func @transform_4(%arg0: i32) -> (i32, i32) {
    %c0_i32 = arith.constant 0 : i32
    %c0_i32_0 = arith.constant 0 : i32
    %c0_i32_1 = arith.constant 0 : i32
    return %c0_i32, %c0_i32_0 : i32, i32
  }
  func.func @transform_5(%arg0: i32) -> (i32, i32) {
    %c0_i32 = arith.constant 0 : i32
    %c0_i32_0 = arith.constant 0 : i32
    %c0_i32_1 = arith.constant 0 : i32
    return %c0_i32, %c0_i32_0 : i32, i32
  }
  func.func @transform_6(%arg0: i32) -> (i32, i32, i32) {
    %c0_i32 = arith.constant 0 : i32
    %c0_i32_0 = arith.constant 0 : i32
    %c0_i32_1 = arith.constant 0 : i32
    return %arg0, %c0_i32, %c0_i32_0 : i32, i32, i32
  }
}

</mosaic_0001>

<llo_original>
// kernel: tpu_custom_call.1
$region0: #{tpu_custom_call.1}
  #allocation0 [shape = 'u32[]', space=smem, size = 0x4, offset = 0x4, fixed_abs, tag = 'smem constant byte address 0x4 - core index']
  #allocation1 [shape = 'u32[72,128]{1,0:T(1,128)}', space=vmem, size = 0x9000, scoped, tag = 'internal scratch']
  #allocation2 [shape = 'f32[1,1]{1,0:T(1,128)S(1)}', space=vmem, size = 0x200, scoped, tag = 'scoped memory for tpu_custom_call.1']
  %s0 = inlined_call_operand.vmem [shape: s32[128,8], index: 0, kind: input, shape index: {}]
  %s1 = inlined_call_operand.vmem [shape: f32[128,1], index: 1, kind: input, shape index: {}]
  %s2 = inlined_call_operand.vmem [shape: bf16[32,128], index: 2, kind: input, shape index: {}]
  %s3 = inlined_call_operand.vmem [shape: f32[1,128], index: 3, kind: input, shape index: {}]
  %s4 = inlined_call_operand.vmem [shape: f32[1,128], index: 4, kind: input, shape index: {}]
  %s5 = inlined_call_operand.<no memory space> [shape: f32[1,1], index: 5, kind: input, shape index: {}]
  %s6 = inlined_call_operand.hbm [shape: f32[1,1,128], index: 6, kind: output, shape index: {}]
  %s7 = sld [smem:[#allocation0]]
  $region34: #{tpu_custom_call.1} parent=0
    _
  %s9 = ssub.s32 1, %s7
  %s10 = scalar_select 0, %s9, %s7
  %v11 = vstv %s5
  %12 = vst [vmem:[#allocation2] sm:$0x1] %v11
  $region1: #{tpu_custom_call.1} parent=0
    #allocation3 [shape = 'u8[512]{0}', space=vmem, size = 0x400, scoped, tag = 'output window, operand 0, single buffered']
    #allocation4 [shape = 's32[1]{0}', space=sflag, size = 0x4, scoped, tag = 'scoped memory for tpu_custom_call.1']
    %13 = vsyncpa [#allocation4], 0
    // Predicated region
    $region2: #{tpu_custom_call.1} parent=1 // pred_check
      _
    $region3: #{tpu_custom_call.1} parent=1 // pred_check_branch
      %15 = sbr.rel (0) target = $region5
    $region4: #{tpu_custom_call.1} parent=1 // pred_region
      _
    $region5: #{tpu_custom_call.1} parent=1 // pred_fallthru
      _
    // Predicated region
    $region6: #{tpu_custom_call.1} parent=1 // pred_check
      _
    $region7: #{tpu_custom_call.1} parent=1 // pred_check_branch
      %17 = sbr.rel (0) target = $region9
    $region8: #{tpu_custom_call.1} parent=1 // pred_region
      _
    $region9: #{tpu_custom_call.1} parent=1 // pred_fallthru
      _
    // Predicated region
    $region10: #{tpu_custom_call.1} parent=1 // pred_check
      _
    $region11: #{tpu_custom_call.1} parent=1 // pred_check_branch
      %19 = sbr.rel (0) target = $region13
    $region12: #{tpu_custom_call.1} parent=1 // pred_region
      _
    $region13: #{tpu_custom_call.1} parent=1 // pred_fallthru
      _
    // Predicated region
    $region14: #{tpu_custom_call.1} parent=1 // pred_check
      _
    $region15: #{tpu_custom_call.1} parent=1 // pred_check_branch
      %21 = sbr.rel (0) target = $region17
    $region16: #{tpu_custom_call.1} parent=1 // pred_region
      _
    $region17: #{tpu_custom_call.1} parent=1 // pred_fallthru
      _
    // Predicated region
    $region18: #{tpu_custom_call.1} parent=1 // pred_check
      _
    $region19: #{tpu_custom_call.1} parent=1 // pred_check_branch
      %23 = sbr.rel (0) target = $region21
    $region20: #{tpu_custom_call.1} parent=1 // pred_region
      _
    $region21: #{tpu_custom_call.1} parent=1 // pred_fallthru
      _
    // Predicated region
    $region22: #{tpu_custom_call.1} parent=1 // pred_check
      _
    $region23: #{tpu_custom_call.1} parent=1 // pred_check_branch
      %25 = sbr.rel (0) target = $region25
    $region24: #{tpu_custom_call.1} parent=1 // pred_region
      _
    $region25: #{tpu_custom_call.1} parent=1 // pred_fallthru
      _
    %v27 = vld [vmem:[%s0] sm:$0xff]
    %v28 = vld [vmem:[%s0 + $0x8] sm:$0xff]
    %v29 = vld [vmem:[%s0 + $0x10] sm:$0xff]
    %v30 = vld [vmem:[%s0 + $0x18] sm:$0xff]
    %v31 = vld [vmem:[%s0 + $0x20] sm:$0xff]
    %v32 = vld [vmem:[%s0 + $0x28] sm:$0xff]
    %v33 = vld [vmem:[%s0 + $0x30] sm:$0xff]
    %v34 = vld [vmem:[%s0 + $0x38] sm:$0xff]
    %v35 = vld [vmem:[%s0 + $0x40] sm:$0xff]
    %v36 = vld [vmem:[%s0 + $0x48] sm:$0xff]
    %v37 = vld [vmem:[%s0 + $0x50] sm:$0xff]
    %v38 = vld [vmem:[%s0 + $0x58] sm:$0xff]
    %v39 = vld [vmem:[%s0 + $0x60] sm:$0xff]
    %v40 = vld [vmem:[%s0 + $0x68] sm:$0xff]
    %v41 = vld [vmem:[%s0 + $0x70] sm:$0xff]
    %v42 = vld [vmem:[%s0 + $0x78] sm:$0xff]
    %v43 = vlaneseq
    %v44 = vand.u32 %v43, 127
    %45 = vset.pattern.permute.xlu0 0
    %46 = vperm.xlu0 %45, %v27
    %v47 = vpop.permute.xlu0 %46
    %48 = vset.pattern.permute.xlu0 0
    %49 = vperm.xlu0 %48, %v28
    %v50 = vpop.permute.xlu0 %49
    %51 = vset.pattern.permute.xlu0 0
    %52 = vperm.xlu0 %51, %v29
    %v53 = vpop.permute.xlu0 %52
    %54 = vset.pattern.permute.xlu0 0
    %55 = vperm.xlu0 %54, %v30
    %v56 = vpop.permute.xlu0 %55
    %57 = vset.pattern.permute.xlu0 0
    %58 = vperm.xlu0 %57, %v31
    %v59 = vpop.permute.xlu0 %58
    %60 = vset.pattern.permute.xlu0 0
    %61 = vperm.xlu0 %60, %v32
    %v62 = vpop.permute.xlu0 %61
    %63 = vset.pattern.permute.xlu0 0
    %64 = vperm.xlu0 %63, %v33
    %v65 = vpop.permute.xlu0 %64
    %66 = vset.pattern.permute.xlu0 0
    %67 = vperm.xlu0 %66, %v34
    %v68 = vpop.permute.xlu0 %67
    %69 = vset.pattern.permute.xlu0 0
    %70 = vperm.xlu0 %69, %v35
    %v71 = vpop.permute.xlu0 %70
    %72 = vset.pattern.permute.xlu0 0
    %73 = vperm.xlu0 %72, %v36
    %v74 = vpop.permute.xlu0 %73
    %75 = vset.pattern.permute.xlu0 0
    %76 = vperm.xlu0 %75, %v37
    %v77 = vpop.permute.xlu0 %76
    %78 = vset.pattern.permute.xlu0 0
    %79 = vperm.xlu0 %78, %v38
    %v80 = vpop.permute.xlu0 %79
    %81 = vset.pattern.permute.xlu0 0
    %82 = vperm.xlu0 %81, %v39
    %v83 = vpop.permute.xlu0 %82
    %84 = vset.pattern.permute.xlu0 0
    %85 = vperm.xlu0 %84, %v40
    %v86 = vpop.permute.xlu0 %85
    %87 = vset.pattern.permute.xlu0 0
    %88 = vperm.xlu0 %87, %v41
    %v89 = vpop.permute.xlu0 %88
    %90 = vset.pattern.permute.xlu0 0
    %91 = vperm.xlu0 %90, %v42
    %v92 = vpop.permute.xlu0 %91
    %vm93 = vcmp.eq.s32.totalorder %v47, %v44
    %vm94 = vcmp.eq.s32.totalorder %v50, %v44
    %vm95 = vcmp.eq.s32.totalorder %v53, %v44
    %vm96 = vcmp.eq.s32.totalorder %v56, %v44
    %vm97 = vcmp.eq.s32.totalorder %v59, %v44
    %vm98 = vcmp.eq.s32.totalorder %v62, %v44
    %vm99 = vcmp.eq.s32.totalorder %v65, %v44
    %vm100 = vcmp.eq.s32.totalorder %v68, %v44
    %vm101 = vcmp.eq.s32.totalorder %v71, %v44
    %vm102 = vcmp.eq.s32.totalorder %v74, %v44
    %vm103 = vcmp.eq.s32.totalorder %v77, %v44
    %vm104 = vcmp.eq.s32.totalorder %v80, %v44
    %vm105 = vcmp.eq.s32.totalorder %v83, %v44
    %vm106 = vcmp.eq.s32.totalorder %v86, %v44
    %vm107 = vcmp.eq.s32.totalorder %v89, %v44
    %vm108 = vcmp.eq.s32.totalorder %v92, %v44
    %v109 = vsel %vm93, 1, 0
    %v110 = vsel %vm94, 1, 0
    %v111 = vsel %vm95, 1, 0
    %v112 = vsel %vm96, 1, 0
    %v113 = vsel %vm97, 1, 0
    %v114 = vsel %vm98, 1, 0
    %v115 = vsel %vm99, 1, 0
    %v116 = vsel %vm100, 1, 0
    %v117 = vsel %vm101, 1, 0
    %v118 = vsel %vm102, 1, 0
    %v119 = vsel %vm103, 1, 0
    %v120 = vsel %vm104, 1, 0
    %v121 = vsel %vm105, 1, 0
    %v122 = vsel %vm106, 1, 0
    %v123 = vsel %vm107, 1, 0
    %v124 = vsel %vm108, 1, 0
    %v125 = vcvt.s32.f32 %v109
    %v126 = vcvt.s32.f32 %v110
    %v127 = vcvt.s32.f32 %v111
    %v128 = vcvt.s32.f32 %v112
    %v129 = vcvt.s32.f32 %v113
    %v130 = vcvt.s32.f32 %v114
    %v131 = vcvt.s32.f32 %v115
    %v132 = vcvt.s32.f32 %v116
    %v133 = vcvt.s32.f32 %v117
    %v134 = vcvt.s32.f32 %v118
    %v135 = vcvt.s32.f32 %v119
    %v136 = vcvt.s32.f32 %v120
    %v137 = vcvt.s32.f32 %v121
    %v138 = vcvt.s32.f32 %v122
    %v139 = vcvt.s32.f32 %v123
    %v140 = vcvt.s32.f32 %v124
    %141 = vset.pattern.permute.xlu0 1
    %142 = vperm.xlu0 %141, %v27
    %v143 = vpop.permute.xlu0 %142
    %144 = vset.pattern.permute.xlu0 1
    %145 = vperm.xlu0 %144, %v28
    %v146 = vpop.permute.xlu0 %145
    %147 = vset.pattern.permute.xlu0 1
    %148 = vperm.xlu0 %147, %v29
    %v149 = vpop.permute.xlu0 %148
    %150 = vset.pattern.permute.xlu0 1
    %151 = vperm.xlu0 %150, %v30
    %v152 = vpop.permute.xlu0 %151
    %153 = vset.pattern.permute.xlu0 1
    %154 = vperm.xlu0 %153, %v31
    %v155 = vpop.permute.xlu0 %154
    %156 = vset.pattern.permute.xlu0 1
    %157 = vperm.xlu0 %156, %v32
    %v158 = vpop.permute.xlu0 %157
    %159 = vset.pattern.permute.xlu0 1
    %160 = vperm.xlu0 %159, %v33
    %v161 = vpop.permute.xlu0 %160
    %162 = vset.pattern.permute.xlu0 1
    %163 = vperm.xlu0 %162, %v34
    %v164 = vpop.permute.xlu0 %163
    %165 = vset.pattern.permute.xlu0 1
    %166 = vperm.xlu0 %165, %v35
    %v167 = vpop.permute.xlu0 %166
    %168 = vset.pattern.permute.xlu0 1
    %169 = vperm.xlu0 %168, %v36
    %v170 = vpop.permute.xlu0 %169
    %171 = vset.pattern.permute.xlu0 1
    %172 = vperm.xlu0 %171, %v37
    %v173 = vpop.permute.xlu0 %172
    %174 = vset.pattern.permute.xlu0 1
    %175 = vperm.xlu0 %174, %v38
    %v176 = vpop.permute.xlu0 %175
    %177 = vset.pattern.permute.xlu0 1
    %178 = vperm.xlu0 %177, %v39
    %v179 = vpop.permute.xlu0 %178
    %180 = vset.pattern.permute.xlu0 1
    %181 = vperm.xlu0 %180, %v40
    %v182 = vpop.permute.xlu0 %181
    %183 = vset.pattern.permute.xlu0 1
    %184 = vperm.xlu0 %183, %v41
    %v185 = vpop.permute.xlu0 %184
    %186 = vset.pattern.permute.xlu0 1
    %187 = vperm.xlu0 %186, %v42
    %v188 = vpop.permute.xlu0 %187
    %vm189 = vcmp.eq.s32.totalorder %v143, %v44
    %vm190 = vcmp.eq.s32.totalorder %v146, %v44
    %vm191 = vcmp.eq.s32.totalorder %v149, %v44
    %vm192 = vcmp.eq.s32.totalorder %v152, %v44
    %vm193 = vcmp.eq.s32.totalorder %v155, %v44
    %vm194 = vcmp.eq.s32.totalorder %v158, %v44
    %vm195 = vcmp.eq.s32.totalorder %v161, %v44
    %vm196 = vcmp.eq.s32.totalorder %v164, %v44
    %vm197 = vcmp.eq.s32.totalorder %v167, %v44
    %vm198 = vcmp.eq.s32.totalorder %v170, %v44
    %vm199 = vcmp.eq.s32.totalorder %v173, %v44
    %vm200 = vcmp.eq.s32.totalorder %v176, %v44
    %vm201 = vcmp.eq.s32.totalorder %v179, %v44
    %vm202 = vcmp.eq.s32.totalorder %v182, %v44
    %vm203 = vcmp.eq.s32.totalorder %v185, %v44
    %vm204 = vcmp.eq.s32.totalorder %v188, %v44
    %v205 = vsel %vm189, 1, 0
    %v206 = vsel %vm190, 1, 0
    %v207 = vsel %vm191, 1, 0
    %v208 = vsel %vm192, 1, 0
    %v209 = vsel %vm193, 1, 0
    %v210 = vsel %vm194, 1, 0
    %v211 = vsel %vm195, 1, 0
    %v212 = vsel %vm196, 1, 0
    %v213 = vsel %vm197, 1, 0
    %v214 = vsel %vm198, 1, 0
    %v215 = vsel %vm199, 1, 0
    %v216 = vsel %vm200, 1, 0
    %v217 = vsel %vm201, 1, 0
    %v218 = vsel %vm202, 1, 0
    %v219 = vsel %vm203, 1, 0
    %v220 = vsel %vm204, 1, 0
    %v221 = vcvt.s32.f32 %v205
    %v222 = vcvt.s32.f32 %v206
    %v223 = vcvt.s32.f32 %v207
    %v224 = vcvt.s32.f32 %v208
    %v225 = vcvt.s32.f32 %v209
    %v226 = vcvt.s32.f32 %v210
    %v227 = vcvt.s32.f32 %v211
    %v228 = vcvt.s32.f32 %v212
    %v229 = vcvt.s32.f32 %v213
    %v230 = vcvt.s32.f32 %v214
    %v231 = vcvt.s32.f32 %v215
    %v232 = vcvt.s32.f32 %v216
    %v233 = vcvt.s32.f32 %v217
    %v234 = vcvt.s32.f32 %v218
    %v235 = vcvt.s32.f32 %v219
    %v236 = vcvt.s32.f32 %v220
    %v237 = vadd.f32 %v125, %v221
    %v238 = vadd.f32 %v126, %v222
    %v239 = vadd.f32 %v127, %v223
    %v240 = vadd.f32 %v128, %v224
    %v241 = vadd.f32 %v129, %v225
    %v242 = vadd.f32 %v130, %v226
    %v243 = vadd.f32 %v131, %v227
    %v244 = vadd.f32 %v132, %v228
    %v245 = vadd.f32 %v133, %v229
    %v246 = vadd.f32 %v134, %v230
    %v247 = vadd.f32 %v135, %v231
    %v248 = vadd.f32 %v136, %v232
    %v249 = vadd.f32 %v137, %v233
    %v250 = vadd.f32 %v138, %v234
    %v251 = vadd.f32 %v139, %v235
    %v252 = vadd.f32 %v140, %v236
    %253 = vset.pattern.permute.xlu0 2
    %254 = vperm.xlu0 %253, %v27
    %v255 = vpop.permute.xlu0 %254
    %256 = vset.pattern.permute.xlu0 2
    %257 = vperm.xlu0 %256, %v28
    %v258 = vpop.permute.xlu0 %257
    %259 = vset.pattern.permute.xlu0 2
    %260 = vperm.xlu0 %259, %v29
    %v261 = vpop.permute.xlu0 %260
    %262 = vset.pattern.permute.xlu0 2
    %263 = vperm.xlu0 %262, %v30
    %v264 = vpop.permute.xlu0 %263
    %265 = vset.pattern.permute.xlu0 2
    %266 = vperm.xlu0 %265, %v31
    %v267 = vpop.permute.xlu0 %266
    %268 = vset.pattern.permute.xlu0 2
    %269 = vperm.xlu0 %268, %v32
    %v270 = vpop.permute.xlu0 %269
    %271 = vset.pattern.permute.xlu0 2
    %272 = vperm.xlu0 %271, %v33
    %v273 = vpop.permute.xlu0 %272
    %274 = vset.pattern.permute.xlu0 2
    %275 = vperm.xlu0 %274, %v34
    %v276 = vpop.permute.xlu0 %275
    %277 = vset.pattern.permute.xlu0 2
    %278 = vperm.xlu0 %277, %v35
    %v279 = vpop.permute.xlu0 %278
    %280 = vset.pattern.permute.xlu0 2
    %281 = vperm.xlu0 %280, %v36
    %v282 = vpop.permute.xlu0 %281
    %283 = vset.pattern.permute.xlu0 2
    %284 = vperm.xlu0 %283, %v37
    %v285 = vpop.permute.xlu0 %284
    %286 = vset.pattern.permute.xlu0 2
    %287 = vperm.xlu0 %286, %v38
    %v288 = vpop.permute.xlu0 %287
    %289 = vset.pattern.permute.xlu0 2
    %290 = vperm.xlu0 %289, %v39
    %v291 = vpop.permute.xlu0 %290
    %292 = vset.pattern.permute.xlu0 2
    %293 = vperm.xlu0 %292, %v40
    %v294 = vpop.permute.xlu0 %293
    %295 = vset.pattern.permute.xlu0 2
    %296 = vperm.xlu0 %295, %v41
    %v297 = vpop.permute.xlu0 %296
    %298 = vset.pattern.permute.xlu0 2
    %299 = vperm.xlu0 %298, %v42
    %v300 = vpop.permute.xlu0 %299
    %vm301 = vcmp.eq.s32.totalorder %v255, %v44
    %vm302 = vcmp.eq.s32.totalorder %v258, %v44
    %vm303 = vcmp.eq.s32.totalorder %v261, %v44
    %vm304 = vcmp.eq.s32.totalorder %v264, %v44
    %vm305 = vcmp.eq.s32.totalorder %v267, %v44
    %vm306 = vcmp.eq.s32.totalorder %v270, %v44
    %vm307 = vcmp.eq.s32.totalorder %v273, %v44
    %vm308 = vcmp.eq.s32.totalorder %v276, %v44
    %vm309 = vcmp.eq.s32.totalorder %v279, %v44
    %vm310 = vcmp.eq.s32.totalorder %v282, %v44
    %vm311 = vcmp.eq.s32.totalorder %v285, %v44
    %vm312 = vcmp.eq.s32.totalorder %v288, %v44
    %vm313 = vcmp.eq.s32.totalorder %v291, %v44
    %vm314 = vcmp.eq.s32.totalorder %v294, %v44
    %vm315 = vcmp.eq.s32.totalorder %v297, %v44
    %vm316 = vcmp.eq.s32.totalorder %v300, %v44
    %v317 = vsel %vm301, 1, 0
    %v318 = vsel %vm302, 1, 0
    %v319 = vsel %vm303, 1, 0
    %v320 = vsel %vm304, 1, 0
    %v321 = vsel %vm305, 1, 0
    %v322 = vsel %vm306, 1, 0
    %v323 = vsel %vm307, 1, 0
    %v324 = vsel %vm308, 1, 0
    %v325 = vsel %vm309, 1, 0
    %v326 = vsel %vm310, 1, 0
    %v327 = vsel %vm311, 1, 0
    %v328 = vsel %vm312, 1, 0
    %v329 = vsel %vm313, 1, 0
    %v330 = vsel %vm314, 1, 0
    %v331 = vsel %vm315, 1, 0
    %v332 = vsel %vm316, 1, 0
    %v333 = vcvt.s32.f32 %v317
    %v334 = vcvt.s32.f32 %v318
    %v335 = vcvt.s32.f32 %v319
    %v336 = vcvt.s32.f32 %v320
    %v337 = vcvt.s32.f32 %v321
    %v338 = vcvt.s32.f32 %v322
    %v339 = vcvt.s32.f32 %v323
    %v340 = vcvt.s32.f32 %v324
    %v341 = vcvt.s32.f32 %v325
    %v342 = vcvt.s32.f32 %v326
    %v343 = vcvt.s32.f32 %v327
    %v344 = vcvt.s32.f32 %v328
    %v345 = vcvt.s32.f32 %v329
    %v346 = vcvt.s32.f32 %v330
    %v347 = vcvt.s32.f32 %v331
    %v348 = vcvt.s32.f32 %v332
    %v349 = vadd.f32 %v237, %v333
    %v350 = vadd.f32 %v238, %v334
    %v351 = vadd.f32 %v239, %v335
    %v352 = vadd.f32 %v240, %v336
    %v353 = vadd.f32 %v241, %v337
    %v354 = vadd.f32 %v242, %v338
    %v355 = vadd.f32 %v243, %v339
    %v356 = vadd.f32 %v244, %v340
    %v357 = vadd.f32 %v245, %v341
    %v358 = vadd.f32 %v246, %v342
    %v359 = vadd.f32 %v247, %v343
    %v360 = vadd.f32 %v248, %v344
    %v361 = vadd.f32 %v249, %v345
    %v362 = vadd.f32 %v250, %v346
    %v363 = vadd.f32 %v251, %v347
    %v364 = vadd.f32 %v252, %v348
    %365 = vset.pattern.permute.xlu0 3
    %366 = vperm.xlu0 %365, %v27
    %v367 = vpop.permute.xlu0 %366
    %368 = vset.pattern.permute.xlu0 3
    %369 = vperm.xlu0 %368, %v28
    %v370 = vpop.permute.xlu0 %369
    %371 = vset.pattern.permute.xlu0 3
    %372 = vperm.xlu0 %371, %v29
    %v373 = vpop.permute.xlu0 %372
    %374 = vset.pattern.permute.xlu0 3
    %375 = vperm.xlu0 %374, %v30
    %v376 = vpop.permute.xlu0 %375
    %377 = vset.pattern.permute.xlu0 3
    %378 = vperm.xlu0 %377, %v31
    %v379 = vpop.permute.xlu0 %378
    %380 = vset.pattern.permute.xlu0 3
    %381 = vperm.xlu0 %380, %v32
    %v382 = vpop.permute.xlu0 %381
    %383 = vset.pattern.permute.xlu0 3
    %384 = vperm.xlu0 %383, %v33
    %v385 = vpop.permute.xlu0 %384
    %386 = vset.pattern.permute.xlu0 3
    %387 = vperm.xlu0 %386, %v34
    %v388 = vpop.permute.xlu0 %387
    %389 = vset.pattern.permute.xlu0 3
    %390 = vperm.xlu0 %389, %v35
    %v391 = vpop.permute.xlu0 %390
    %392 = vset.pattern.permute.xlu0 3
    %393 = vperm.xlu0 %392, %v36
    %v394 = vpop.permute.xlu0 %393
    %395 = vset.pattern.permute.xlu0 3
    %396 = vperm.xlu0 %395, %v37
    %v397 = vpop.permute.xlu0 %396
    %398 = vset.pattern.permute.xlu0 3
    %399 = vperm.xlu0 %398, %v38
    %v400 = vpop.permute.xlu0 %399
    %401 = vset.pattern.permute.xlu0 3
    %402 = vperm.xlu0 %401, %v39
    %v403 = vpop.permute.xlu0 %402
    %404 = vset.pattern.permute.xlu0 3
    %405 = vperm.xlu0 %404, %v40
    %v406 = vpop.permute.xlu0 %405
    %407 = vset.pattern.permute.xlu0 3
    %408 = vperm.xlu0 %407, %v41
    %v409 = vpop.permute.xlu0 %408
    %410 = vset.pattern.permute.xlu0 3
    %411 = vperm.xlu0 %410, %v42
    %v412 = vpop.permute.xlu0 %411
    %vm413 = vcmp.eq.s32.totalorder %v367, %v44
    %vm414 = vcmp.eq.s32.totalorder %v370, %v44
    %vm415 = vcmp.eq.s32.totalorder %v373, %v44
    %vm416 = vcmp.eq.s32.totalorder %v376, %v44
    %vm417 = vcmp.eq.s32.totalorder %v379, %v44
    %vm418 = vcmp.eq.s32.totalorder %v382, %v44
    %vm419 = vcmp.eq.s32.totalorder %v385, %v44
    %vm420 = vcmp.eq.s32.totalorder %v388, %v44
    %vm421 = vcmp.eq.s32.totalorder %v391, %v44
    %vm422 = vcmp.eq.s32.totalorder %v394, %v44
    %vm423 = vcmp.eq.s32.totalorder %v397, %v44
    %vm424 = vcmp.eq.s32.totalorder %v400, %v44
    %vm425 = vcmp.eq.s32.totalorder %v403, %v44
    %vm426 = vcmp.eq.s32.totalorder %v406, %v44
    %vm427 = vcmp.eq.s32.totalorder %v409, %v44
    %vm428 = vcmp.eq.s32.totalorder %v412, %v44
    %v429 = vsel %vm413, 1, 0
    %v430 = vsel %vm414, 1, 0
    %v431 = vsel %vm415, 1, 0
    %v432 = vsel %vm416, 1, 0
    %v433 = vsel %vm417, 1, 0
    %v434 = vsel %vm418, 1, 0
    %v435 = vsel %vm419, 1, 0
    %v436 = vsel %vm420, 1, 0
    %v437 = vsel %vm421, 1, 0
    %v438 = vsel %vm422, 1, 0
    %v439 = vsel %vm423, 1, 0
    %v440 = vsel %vm424, 1, 0
    %v441 = vsel %vm425, 1, 0
    %v442 = vsel %vm426, 1, 0
    %v443 = vsel %vm427, 1, 0
    %v444 = vsel %vm428, 1, 0
    %v445 = vcvt.s32.f32 %v429
    %v446 = vcvt.s32.f32 %v430
    %v447 = vcvt.s32.f32 %v431
    %v448 = vcvt.s32.f32 %v432
    %v449 = vcvt.s32.f32 %v433
    %v450 = vcvt.s32.f32 %v434
    %v451 = vcvt.s32.f32 %v435
    %v452 = vcvt.s32.f32 %v436
    %v453 = vcvt.s32.f32 %v437
    %v454 = vcvt.s32.f32 %v438
    %v455 = vcvt.s32.f32 %v439
    %v456 = vcvt.s32.f32 %v440
    %v457 = vcvt.s32.f32 %v441
    %v458 = vcvt.s32.f32 %v442
    %v459 = vcvt.s32.f32 %v443
    %v460 = vcvt.s32.f32 %v444
    %v461 = vadd.f32 %v349, %v445
    %v462 = vadd.f32 %v350, %v446
    %v463 = vadd.f32 %v351, %v447
    %v464 = vadd.f32 %v352, %v448
    %v465 = vadd.f32 %v353, %v449
    %v466 = vadd.f32 %v354, %v450
    %v467 = vadd.f32 %v355, %v451
    %v468 = vadd.f32 %v356, %v452
    %v469 = vadd.f32 %v357, %v453
    %v470 = vadd.f32 %v358, %v454
    %v471 = vadd.f32 %v359, %v455
    %v472 = vadd.f32 %v360, %v456
    %v473 = vadd.f32 %v361, %v457
    %v474 = vadd.f32 %v362, %v458
    %v475 = vadd.f32 %v363, %v459
    %v476 = vadd.f32 %v364, %v460
    %477 = vset.pattern.permute.xlu0 4
    %478 = vperm.xlu0 %477, %v27
    %v479 = vpop.permute.xlu0 %478
    %480 = vset.pattern.permute.xlu0 4
    %481 = vperm.xlu0 %480, %v28
    %v482 = vpop.permute.xlu0 %481
    %483 = vset.pattern.permute.xlu0 4
    %484 = vperm.xlu0 %483, %v29
    %v485 = vpop.permute.xlu0 %484
    %486 = vset.pattern.permute.xlu0 4
    %487 = vperm.xlu0 %486, %v30
    %v488 = vpop.permute.xlu0 %487
    %489 = vset.pattern.permute.xlu0 4
    %490 = vperm.xlu0 %489, %v31
    %v491 = vpop.permute.xlu0 %490
    %492 = vset.pattern.permute.xlu0 4
    %493 = vperm.xlu0 %492, %v32
    %v494 = vpop.permute.xlu0 %493
    %495 = vset.pattern.permute.xlu0 4
    %496 = vperm.xlu0 %495, %v33
    %v497 = vpop.permute.xlu0 %496
    %498 = vset.pattern.permute.xlu0 4
    %499 = vperm.xlu0 %498, %v34
    %v500 = vpop.permute.xlu0 %499
    %501 = vset.pattern.permute.xlu0 4
    %502 = vperm.xlu0 %501, %v35
    %v503 = vpop.permute.xlu0 %502
    %504 = vset.pattern.permute.xlu0 4
    %505 = vperm.xlu0 %504, %v36
    %v506 = vpop.permute.xlu0 %505
    %507 = vset.pattern.permute.xlu0 4
    %508 = vperm.xlu0 %507, %v37
    %v509 = vpop.permute.xlu0 %508
    %510 = vset.pattern.permute.xlu0 4
    %511 = vperm.xlu0 %510, %v38
    %v512 = vpop.permute.xlu0 %511
    %513 = vset.pattern.permute.xlu0 4
    %514 = vperm.xlu0 %513, %v39
    %v515 = vpop.permute.xlu0 %514
    %516 = vset.pattern.permute.xlu0 4
    %517 = vperm.xlu0 %516, %v40
    %v518 = vpop.permute.xlu0 %517
    %519 = vset.pattern.permute.xlu0 4
    %520 = vperm.xlu0 %519, %v41
    %v521 = vpop.permute.xlu0 %520
    %522 = vset.pattern.permute.xlu0 4
    %523 = vperm.xlu0 %522, %v42
    %v524 = vpop.permute.xlu0 %523
    %vm525 = vcmp.eq.s32.totalorder %v479, %v44
    %vm526 = vcmp.eq.s32.totalorder %v482, %v44
    %vm527 = vcmp.eq.s32.totalorder %v485, %v44
    %vm528 = vcmp.eq.s32.totalorder %v488, %v44
    %vm529 = vcmp.eq.s32.totalorder %v491, %v44
    %vm530 = vcmp.eq.s32.totalorder %v494, %v44
    %vm531 = vcmp.eq.s32.totalorder %v497, %v44
    %vm532 = vcmp.eq.s32.totalorder %v500, %v44
    %vm533 = vcmp.eq.s32.totalorder %v503, %v44
    %vm534 = vcmp.eq.s32.totalorder %v506, %v44
    %vm535 = vcmp.eq.s32.totalorder %v509, %v44
    %vm536 = vcmp.eq.s32.totalorder %v512, %v44
    %vm537 = vcmp.eq.s32.totalorder %v515, %v44
    %vm538 = vcmp.eq.s32.totalorder %v518, %v44
    %vm539 = vcmp.eq.s32.totalorder %v521, %v44
    %vm540 = vcmp.eq.s32.totalorder %v524, %v44
    %v541 = vsel %vm525, 1, 0
    %v542 = vsel %vm526, 1, 0
    %v543 = vsel %vm527, 1, 0
    %v544 = vsel %vm528, 1, 0
    %v545 = vsel %vm529, 1, 0
    %v546 = vsel %vm530, 1, 0
    %v547 = vsel %vm531, 1, 0
    %v548 = vsel %vm532, 1, 0
    %v549 = vsel %vm533, 1, 0
    %v550 = vsel %vm534, 1, 0
    %v551 = vsel %vm535, 1, 0
    %v552 = vsel %vm536, 1, 0
    %v553 = vsel %vm537, 1, 0
    %v554 = vsel %vm538, 1, 0
    %v555 = vsel %vm539, 1, 0
    %v556 = vsel %vm540, 1, 0
    %v557 = vcvt.s32.f32 %v541
    %v558 = vcvt.s32.f32 %v542
    %v559 = vcvt.s32.f32 %v543
    %v560 = vcvt.s32.f32 %v544
    %v561 = vcvt.s32.f32 %v545
    %v562 = vcvt.s32.f32 %v546
    %v563 = vcvt.s32.f32 %v547
    %v564 = vcvt.s32.f32 %v548
    %v565 = vcvt.s32.f32 %v549
    %v566 = vcvt.s32.f32 %v550
    %v567 = vcvt.s32.f32 %v551
    %v568 = vcvt.s32.f32 %v552
    %v569 = vcvt.s32.f32 %v553
    %v570 = vcvt.s32.f32 %v554
    %v571 = vcvt.s32.f32 %v555
    %v572 = vcvt.s32.f32 %v556
    %v573 = vadd.f32 %v461, %v557
    %v574 = vadd.f32 %v462, %v558
    %v575 = vadd.f32 %v463, %v559
    %v576 = vadd.f32 %v464, %v560
    %v577 = vadd.f32 %v465, %v561
    %v578 = vadd.f32 %v466, %v562
    %v579 = vadd.f32 %v467, %v563
    %v580 = vadd.f32 %v468, %v564
    %v581 = vadd.f32 %v469, %v565
    %v582 = vadd.f32 %v470, %v566
    %v583 = vadd.f32 %v471, %v567
    %v584 = vadd.f32 %v472, %v568
    %v585 = vadd.f32 %v473, %v569
    %v586 = vadd.f32 %v474, %v570
    %v587 = vadd.f32 %v475, %v571
    %v588 = vadd.f32 %v476, %v572
    %589 = vset.pattern.permute.xlu0 5
    %590 = vperm.xlu0 %589, %v27
    %v591 = vpop.permute.xlu0 %590
    %592 = vset.pattern.permute.xlu0 5
    %593 = vperm.xlu0 %592, %v28
    %v594 = vpop.permute.xlu0 %593
    %595 = vset.pattern.permute.xlu0 5
    %596 = vperm.xlu0 %595, %v29
    %v597 = vpop.permute.xlu0 %596
    %598 = vset.pattern.permute.xlu0 5
    %599 = vperm.xlu0 %598, %v30
    %v600 = vpop.permute.xlu0 %599
    %601 = vset.pattern.permute.xlu0 5
    %602 = vperm.xlu0 %601, %v31
    %v603 = vpop.permute.xlu0 %602
    %604 = vset.pattern.permute.xlu0 5
    %605 = vperm.xlu0 %604, %v32
    %v606 = vpop.permute.xlu0 %605
    %607 = vset.pattern.permute.xlu0 5
    %608 = vperm.xlu0 %607, %v33
    %v609 = vpop.permute.xlu0 %608
    %610 = vset.pattern.permute.xlu0 5
    %611 = vperm.xlu0 %610, %v34
    %v612 = vpop.permute.xlu0 %611
    %613 = vset.pattern.permute.xlu0 5
    %614 = vperm.xlu0 %613, %v35
    %v615 = vpop.permute.xlu0 %614
    %616 = vset.pattern.permute.xlu0 5
    %617 = vperm.xlu0 %616, %v36
    %v618 = vpop.permute.xlu0 %617
    %619 = vset.pattern.permute.xlu0 5
    %620 = vperm.xlu0 %619, %v37
    %v621 = vpop.permute.xlu0 %620
    %622 = vset.pattern.permute.xlu0 5
    %623 = vperm.xlu0 %622, %v38
    %v624 = vpop.permute.xlu0 %623
    %625 = vset.pattern.permute.xlu0 5
    %626 = vperm.xlu0 %625, %v39
    %v627 = vpop.permute.xlu0 %626
    %628 = vset.pattern.permute.xlu0 5
    %629 = vperm.xlu0 %628, %v40
    %v630 = vpop.permute.xlu0 %629
    %631 = vset.pattern.permute.xlu0 5
    %632 = vperm.xlu0 %631, %v41
    %v633 = vpop.permute.xlu0 %632
    %634 = vset.pattern.permute.xlu0 5
    %635 = vperm.xlu0 %634, %v42
    %v636 = vpop.permute.xlu0 %635
    %vm637 = vcmp.eq.s32.totalorder %v591, %v44
    %vm638 = vcmp.eq.s32.totalorder %v594, %v44
    %vm639 = vcmp.eq.s32.totalorder %v597, %v44
    %vm640 = vcmp.eq.s32.totalorder %v600, %v44
    %vm641 = vcmp.eq.s32.totalorder %v603, %v44
    %vm642 = vcmp.eq.s32.totalorder %v606, %v44
    %vm643 = vcmp.eq.s32.totalorder %v609, %v44
    %vm644 = vcmp.eq.s32.totalorder %v612, %v44
    %vm645 = vcmp.eq.s32.totalorder %v615, %v44
    %vm646 = vcmp.eq.s32.totalorder %v618, %v44
    %vm647 = vcmp.eq.s32.totalorder %v621, %v44
    %vm648 = vcmp.eq.s32.totalorder %v624, %v44
    %vm649 = vcmp.eq.s32.totalorder %v627, %v44
    %vm650 = vcmp.eq.s32.totalorder %v630, %v44
    %vm651 = vcmp.eq.s32.totalorder %v633, %v44
    %vm652 = vcmp.eq.s32.totalorder %v636, %v44
    %v653 = vsel %vm637, 1, 0
    %v654 = vsel %vm638, 1, 0
    %v655 = vsel %vm639, 1, 0
    %v656 = vsel %vm640, 1, 0
    %v657 = vsel %vm641, 1, 0
    %v658 = vsel %vm642, 1, 0
    %v659 = vsel %vm643, 1, 0
    %v660 = vsel %vm644, 1, 0
    %v661 = vsel %vm645, 1, 0
    %v662 = vsel %vm646, 1, 0
    %v663 = vsel %vm647, 1, 0
    %v664 = vsel %vm648, 1, 0
    %v665 = vsel %vm649, 1, 0
    %v666 = vsel %vm650, 1, 0
    %v667 = vsel %vm651, 1, 0
    %v668 = vsel %vm652, 1, 0
    %v669 = vcvt.s32.f32 %v653
    %v670 = vcvt.s32.f32 %v654
    %v671 = vcvt.s32.f32 %v655
    %v672 = vcvt.s32.f32 %v656
    %v673 = vcvt.s32.f32 %v657
    %v674 = vcvt.s32.f32 %v658
    %v675 = vcvt.s32.f32 %v659
    %v676 = vcvt.s32.f32 %v660
    %v677 = vcvt.s32.f32 %v661
    %v678 = vcvt.s32.f32 %v662
    %v679 = vcvt.s32.f32 %v663
    %v680 = vcvt.s32.f32 %v664
    %v681 = vcvt.s32.f32 %v665
    %v682 = vcvt.s32.f32 %v666
    %v683 = vcvt.s32.f32 %v667
    %v684 = vcvt.s32.f32 %v668
    %v685 = vadd.f32 %v573, %v669
    %v686 = vadd.f32 %v574, %v670
    %v687 = vadd.f32 %v575, %v671
    %v688 = vadd.f32 %v576, %v672
    %v689 = vadd.f32 %v577, %v673
    %v690 = vadd.f32 %v578, %v674
    %v691 = vadd.f32 %v579, %v675
    %v692 = vadd.f32 %v580, %v676
    %v693 = vadd.f32 %v581, %v677
    %v694 = vadd.f32 %v582, %v678
    %v695 = vadd.f32 %v583, %v679
    %v696 = vadd.f32 %v584, %v680
    %v697 = vadd.f32 %v585, %v681
    %v698 = vadd.f32 %v586, %v682
    %v699 = vadd.f32 %v587, %v683
    %v700 = vadd.f32 %v588, %v684
    %701 = vset.pattern.permute.xlu0 6
    %702 = vperm.xlu0 %701, %v27
    %v703 = vpop.permute.xlu0 %702
    %704 = vset.pattern.permute.xlu0 6
    %705 = vperm.xlu0 %704, %v28
    %v706 = vpop.permute.xlu0 %705
    %707 = vset.pattern.permute.xlu0 6
    %708 = vperm.xlu0 %707, %v29
    %v709 = vpop.permute.xlu0 %708
    %710 = vset.pattern.permute.xlu0 6
    %711 = vperm.xlu0 %710, %v30
    %v712 = vpop.permute.xlu0 %711
    %713 = vset.pattern.permute.xlu0 6
    %714 = vperm.xlu0 %713, %v31
    %v715 = vpop.permute.xlu0 %714
    %716 = vset.pattern.permute.xlu0 6
    %717 = vperm.xlu0 %716, %v32
    %v718 = vpop.permute.xlu0 %717
    %719 = vset.pattern.permute.xlu0 6
    %720 = vperm.xlu0 %719, %v33
    %v721 = vpop.permute.xlu0 %720
    %722 = vset.pattern.permute.xlu0 6
    %723 = vperm.xlu0 %722, %v34
    %v724 = vpop.permute.xlu0 %723
    %725 = vset.pattern.permute.xlu0 6
    %726 = vperm.xlu0 %725, %v35
    %v727 = vpop.permute.xlu0 %726
    %728 = vset.pattern.permute.xlu0 6
    %729 = vperm.xlu0 %728, %v36
    %v730 = vpop.permute.xlu0 %729
    %731 = vset.pattern.permute.xlu0 6
    %732 = vperm.xlu0 %731, %v37
    %v733 = vpop.permute.xlu0 %732
    %734 = vset.pattern.permute.xlu0 6
    %735 = vperm.xlu0 %734, %v38
    %v736 = vpop.permute.xlu0 %735
    %737 = vset.pattern.permute.xlu0 6
    %738 = vperm.xlu0 %737, %v39
    %v739 = vpop.permute.xlu0 %738
    %740 = vset.pattern.permute.xlu0 6
    %741 = vperm.xlu0 %740, %v40
    %v742 = vpop.permute.xlu0 %741
    %743 = vset.pattern.permute.xlu0 6
    %744 = vperm.xlu0 %743, %v41
    %v745 = vpop.permute.xlu0 %744
    %746 = vset.pattern.permute.xlu0 6
    %747 = vperm.xlu0 %746, %v42
    %v748 = vpop.permute.xlu0 %747
    %vm749 = vcmp.eq.s32.totalorder %v703, %v44
    %vm750 = vcmp.eq.s32.totalorder %v706, %v44
    %vm751 = vcmp.eq.s32.totalorder %v709, %v44
    %vm752 = vcmp.eq.s32.totalorder %v712, %v44
    %vm753 = vcmp.eq.s32.totalorder %v715, %v44
    %vm754 = vcmp.eq.s32.totalorder %v718, %v44
    %vm755 = vcmp.eq.s32.totalorder %v721, %v44
    %vm756 = vcmp.eq.s32.totalorder %v724, %v44
    %vm757 = vcmp.eq.s32.totalorder %v727, %v44
    %vm758 = vcmp.eq.s32.totalorder %v730, %v44
    %vm759 = vcmp.eq.s32.totalorder %v733, %v44
    %vm760 = vcmp.eq.s32.totalorder %v736, %v44
    %vm761 = vcmp.eq.s32.totalorder %v739, %v44
    %vm762 = vcmp.eq.s32.totalorder %v742, %v44
    %vm763 = vcmp.eq.s32.totalorder %v745, %v44
    %vm764 = vcmp.eq.s32.totalorder %v748, %v44
    %v765 = vsel %vm749, 1, 0
    %v766 = vsel %vm750, 1, 0
    %v767 = vsel %vm751, 1, 0
    %v768 = vsel %vm752, 1, 0
    %v769 = vsel %vm753, 1, 0
    %v770 = vsel %vm754, 1, 0
    %v771 = vsel %vm755, 1, 0
    %v772 = vsel %vm756, 1, 0
    %v773 = vsel %vm757, 1, 0
    %v774 = vsel %vm758, 1, 0
    %v775 = vsel %vm759, 1, 0
    %v776 = vsel %vm760, 1, 0
    %v777 = vsel %vm761, 1, 0
    %v778 = vsel %vm762, 1, 0
    %v779 = vsel %vm763, 1, 0
    %v780 = vsel %vm764, 1, 0
    %v781 = vcvt.s32.f32 %v765
    %v782 = vcvt.s32.f32 %v766
    %v783 = vcvt.s32.f32 %v767
    %v784 = vcvt.s32.f32 %v768
    %v785 = vcvt.s32.f32 %v769
    %v786 = vcvt.s32.f32 %v770
    %v787 = vcvt.s32.f32 %v771
    %v788 = vcvt.s32.f32 %v772
    %v789 = vcvt.s32.f32 %v773
    %v790 = vcvt.s32.f32 %v774
    %v791 = vcvt.s32.f32 %v775
    %v792 = vcvt.s32.f32 %v776
    %v793 = vcvt.s32.f32 %v777
    %v794 = vcvt.s32.f32 %v778
    %v795 = vcvt.s32.f32 %v779
    %v796 = vcvt.s32.f32 %v780
    %v797 = vadd.f32 %v685, %v781
    %v798 = vadd.f32 %v686, %v782
    %v799 = vadd.f32 %v687, %v783
    %v800 = vadd.f32 %v688, %v784
    %v801 = vadd.f32 %v689, %v785
    %v802 = vadd.f32 %v690, %v786
    %v803 = vadd.f32 %v691, %v787
    %v804 = vadd.f32 %v692, %v788
    %v805 = vadd.f32 %v693, %v789
    %v806 = vadd.f32 %v694, %v790
    %v807 = vadd.f32 %v695, %v791
    %v808 = vadd.f32 %v696, %v792
    %v809 = vadd.f32 %v697, %v793
    %v810 = vadd.f32 %v698, %v794
    %v811 = vadd.f32 %v699, %v795
    %v812 = vadd.f32 %v700, %v796
    %813 = vset.pattern.permute.xlu0 7
    %814 = vperm.xlu0 %813, %v27
    %v815 = vpop.permute.xlu0 %814
    %816 = vset.pattern.permute.xlu0 7
    %817 = vperm.xlu0 %816, %v28
    %v818 = vpop.permute.xlu0 %817
    %819 = vset.pattern.permute.xlu0 7
    %820 = vperm.xlu0 %819, %v29
    %v821 = vpop.permute.xlu0 %820
    %822 = vset.pattern.permute.xlu0 7
    %823 = vperm.xlu0 %822, %v30
    %v824 = vpop.permute.xlu0 %823
    %825 = vset.pattern.permute.xlu0 7
    %826 = vperm.xlu0 %825, %v31
    %v827 = vpop.permute.xlu0 %826
    %828 = vset.pattern.permute.xlu0 7
    %829 = vperm.xlu0 %828, %v32
    %v830 = vpop.permute.xlu0 %829
    %831 = vset.pattern.permute.xlu0 7
    %832 = vperm.xlu0 %831, %v33
    %v833 = vpop.permute.xlu0 %832
    %834 = vset.pattern.permute.xlu0 7
    %835 = vperm.xlu0 %834, %v34
    %v836 = vpop.permute.xlu0 %835
    %837 = vset.pattern.permute.xlu0 7
    %838 = vperm.xlu0 %837, %v35
    %v839 = vpop.permute.xlu0 %838
    %840 = vset.pattern.permute.xlu0 7
    %841 = vperm.xlu0 %840, %v36
    %v842 = vpop.permute.xlu0 %841
    %843 = vset.pattern.permute.xlu0 7
    %844 = vperm.xlu0 %843, %v37
    %v845 = vpop.permute.xlu0 %844
    %846 = vset.pattern.permute.xlu0 7
    %847 = vperm.xlu0 %846, %v38
    %v848 = vpop.permute.xlu0 %847
    %849 = vset.pattern.permute.xlu0 7
    %850 = vperm.xlu0 %849, %v39
    %v851 = vpop.permute.xlu0 %850
    %852 = vset.pattern.permute.xlu0 7
    %853 = vperm.xlu0 %852, %v40
    %v854 = vpop.permute.xlu0 %853
    %855 = vset.pattern.permute.xlu0 7
    %856 = vperm.xlu0 %855, %v41
    %v857 = vpop.permute.xlu0 %856
    %858 = vset.pattern.permute.xlu0 7
    %859 = vperm.xlu0 %858, %v42
    %v860 = vpop.permute.xlu0 %859
    %vm861 = vcmp.eq.s32.totalorder %v815, %v44
    %vm862 = vcmp.eq.s32.totalorder %v818, %v44
    %vm863 = vcmp.eq.s32.totalorder %v821, %v44
    %vm864 = vcmp.eq.s32.totalorder %v824, %v44
    %vm865 = vcmp.eq.s32.totalorder %v827, %v44
    %vm866 = vcmp.eq.s32.totalorder %v830, %v44
    %vm867 = vcmp.eq.s32.totalorder %v833, %v44
    %vm868 = vcmp.eq.s32.totalorder %v836, %v44
    %vm869 = vcmp.eq.s32.totalorder %v839, %v44
    %vm870 = vcmp.eq.s32.totalorder %v842, %v44
    %vm871 = vcmp.eq.s32.totalorder %v845, %v44
    %vm872 = vcmp.eq.s32.totalorder %v848, %v44
    %vm873 = vcmp.eq.s32.totalorder %v851, %v44
    %vm874 = vcmp.eq.s32.totalorder %v854, %v44
    %vm875 = vcmp.eq.s32.totalorder %v857, %v44
    %vm876 = vcmp.eq.s32.totalorder %v860, %v44
    %v877 = vsel %vm861, 1, 0
    %v878 = vsel %vm862, 1, 0
    %v879 = vsel %vm863, 1, 0
    %v880 = vsel %vm864, 1, 0
    %v881 = vsel %vm865, 1, 0
    %v882 = vsel %vm866, 1, 0
    %v883 = vsel %vm867, 1, 0
    %v884 = vsel %vm868, 1, 0
    %v885 = vsel %vm869, 1, 0
    %v886 = vsel %vm870, 1, 0
    %v887 = vsel %vm871, 1, 0
    %v888 = vsel %vm872, 1, 0
    %v889 = vsel %vm873, 1, 0
    %v890 = vsel %vm874, 1, 0
    %v891 = vsel %vm875, 1, 0
    %v892 = vsel %vm876, 1, 0
    %v893 = vcvt.s32.f32 %v877
    %v894 = vcvt.s32.f32 %v878
    %v895 = vcvt.s32.f32 %v879
    %v896 = vcvt.s32.f32 %v880
    %v897 = vcvt.s32.f32 %v881
    %v898 = vcvt.s32.f32 %v882
    %v899 = vcvt.s32.f32 %v883
    %v900 = vcvt.s32.f32 %v884
    %v901 = vcvt.s32.f32 %v885
    %v902 = vcvt.s32.f32 %v886
    %v903 = vcvt.s32.f32 %v887
    %v904 = vcvt.s32.f32 %v888
    %v905 = vcvt.s32.f32 %v889
    %v906 = vcvt.s32.f32 %v890
    %v907 = vcvt.s32.f32 %v891
    %v908 = vcvt.s32.f32 %v892
    %v909 = vadd.f32 %v797, %v893
    %v910 = vadd.f32 %v798, %v894
    %v911 = vadd.f32 %v799, %v895
    %v912 = vadd.f32 %v800, %v896
    %v913 = vadd.f32 %v801, %v897
    %v914 = vadd.f32 %v802, %v898
    %v915 = vadd.f32 %v803, %v899
    %v916 = vadd.f32 %v804, %v900
    %v917 = vadd.f32 %v805, %v901
    %v918 = vadd.f32 %v806, %v902
    %v919 = vadd.f32 %v807, %v903
    %v920 = vadd.f32 %v808, %v904
    %v921 = vadd.f32 %v809, %v905
    %v922 = vadd.f32 %v810, %v906
    %v923 = vadd.f32 %v811, %v907
    %v924 = vadd.f32 %v812, %v908
    %v925 = vpack.c.bf16 %v910, %v909
    %v926 = vpack.c.bf16 %v912, %v911
    %v927 = vpack.c.bf16 %v914, %v913
    %v928 = vpack.c.bf16 %v916, %v915
    %v929 = vpack.c.bf16 %v918, %v917
    %v930 = vpack.c.bf16 %v920, %v919
    %v931 = vpack.c.bf16 %v922, %v921
    %v932 = vpack.c.bf16 %v924, %v923
    %v933 = vld [vmem:[%s2] sm:$0xf]
    %v934 = vld [vmem:[%s2 + $0x4] sm:$0xf]
    %v935 = vld [vmem:[%s2 + $0x8] sm:$0xf]
    %v936 = vld [vmem:[%s2 + $0xc] sm:$0xf]
    %v941 = vunpack.c.l.b16 %v933
    %v942 = vunpack.c.l.b16 %v934
    %v943 = vunpack.c.l.b16 %v935
    %v944 = vunpack.c.l.b16 %v936
    %v945 = vpack.c.b16 %v942, %v941
    %v946 = vpack.c.b16 %v944, %v943
    %vm949 = vcmask 261120
    %v951 = vsel %vm949, %v925, 0
    %v954 = vsel %vm949, %v926, 0
    %v957 = vsel %vm949, %v927, 0
    %v960 = vsel %vm949, %v928, 0
    %v963 = vsel %vm949, %v929, 0
    %v966 = vsel %vm949, %v930, 0
    %v969 = vsel %vm949, %v931, 0
    %v972 = vsel %vm949, %v932, 0
    %974 = vmatpush.bf16.msra.mxu0 0
    %975 = vmatpush.bf16.msra.mxu0 0
    %976 = vmatpush.bf16.msra.mxu0 0
    %977 = vmatpush.bf16.msra.mxu0 0
    %978 = vmatpush.bf16.msra.mxu0 0
    %979 = vmatpush.bf16.msra.mxu0 0
    %980 = vmatpush.bf16.msra.mxu0 %v946
    %981 = vmatpush.bf16.msra.mxu0 %v945
    %982 = vmatmul.bf16.gmra.mxu0 %v951
    %v983 = vpop.f32.mrf.mxu0
    %v984 = vadd.f32 0.0, %v983
    %v985 = vpop.f32.mrf.mxu0
    %v986 = vadd.f32 0.0, %v985
    %987 = vmatmul.bf16.gmra.mxu0 %v954
    %v988 = vpop.f32.mrf.mxu0
    %v989 = vadd.f32 0.0, %v988
    %v990 = vpop.f32.mrf.mxu0
    %v991 = vadd.f32 0.0, %v990
    %992 = vmatmul.bf16.gmra.mxu0 %v957
    %v993 = vpop.f32.mrf.mxu0
    %v994 = vadd.f32 0.0, %v993
    %v995 = vpop.f32.mrf.mxu0
    %v996 = vadd.f32 0.0, %v995
    %997 = vmatmul.bf16.gmra.mxu0 %v960
    %v998 = vpop.f32.mrf.mxu0
    %v999 = vadd.f32 0.0, %v998
    %v1000 = vpop.f32.mrf.mxu0
    %v1001 = vadd.f32 0.0, %v1000
    %1002 = vmatmul.bf16.gmra.mxu0 %v963
    %v1003 = vpop.f32.mrf.mxu0
    %v1004 = vadd.f32 0.0, %v1003
    %v1005 = vpop.f32.mrf.mxu0
    %v1006 = vadd.f32 0.0, %v1005
    %1007 = vmatmul.bf16.gmra.mxu0 %v966
    %v1008 = vpop.f32.mrf.mxu0
    %v1009 = vadd.f32 0.0, %v1008
    %v1010 = vpop.f32.mrf.mxu0
    %v1011 = vadd.f32 0.0, %v1010
    %1012 = vmatmul.bf16.gmra.mxu0 %v969
    %v1013 = vpop.f32.mrf.mxu0
    %v1014 = vadd.f32 0.0, %v1013
    %v1015 = vpop.f32.mrf.mxu0
    %v1016 = vadd.f32 0.0, %v1015
    %1017 = vmatmul.bf16.gmra.mxu0 %v972
    %v1018 = vpop.f32.mrf.mxu0
    %v1019 = vadd.f32 0.0, %v1018
    %v1020 = vpop.f32.mrf.mxu0
    %v1021 = vadd.f32 0.0, %v1020
    %1022 = vdwg.mxu0
    %v1023 = vld [vmem:[%s1] sm:$0xff]
    %v1024 = vld [vmem:[%s1 + $0x8] sm:$0xff]
    %v1025 = vld [vmem:[%s1 + $0x10] sm:$0xff]
    %v1026 = vld [vmem:[%s1 + $0x18] sm:$0xff]
    %v1027 = vld [vmem:[%s1 + $0x20] sm:$0xff]
    %v1028 = vld [vmem:[%s1 + $0x28] sm:$0xff]
    %v1029 = vld [vmem:[%s1 + $0x30] sm:$0xff]
    %v1030 = vld [vmem:[%s1 + $0x38] sm:$0xff]
    %v1031 = vld [vmem:[%s1 + $0x40] sm:$0xff]
    %v1032 = vld [vmem:[%s1 + $0x48] sm:$0xff]
    %v1033 = vld [vmem:[%s1 + $0x50] sm:$0xff]
    %v1034 = vld [vmem:[%s1 + $0x58] sm:$0xff]
    %v1035 = vld [vmem:[%s1 + $0x60] sm:$0xff]
    %v1036 = vld [vmem:[%s1 + $0x68] sm:$0xff]
    %v1037 = vld [vmem:[%s1 + $0x70] sm:$0xff]
    %v1038 = vld [vmem:[%s1 + $0x78] sm:$0xff]
    %v1039 = vmax.f32 %v1023, 1.0
    %v1040 = vmax.f32 %v1024, 1.0
    %v1041 = vmax.f32 %v1025, 1.0
    %v1042 = vmax.f32 %v1026, 1.0
    %v1043 = vmax.f32 %v1027, 1.0
    %v1044 = vmax.f32 %v1028, 1.0
    %v1045 = vmax.f32 %v1029, 1.0
    %v1046 = vmax.f32 %v1030, 1.0
    %v1047 = vmax.f32 %v1031, 1.0
    %v1048 = vmax.f32 %v1032, 1.0
    %v1049 = vmax.f32 %v1033, 1.0
    %v1050 = vmax.f32 %v1034, 1.0
    %v1051 = vmax.f32 %v1035, 1.0
    %v1052 = vmax.f32 %v1036, 1.0
    %v1053 = vmax.f32 %v1037, 1.0
    %v1054 = vmax.f32 %v1038, 1.0
    %v1055 = vrcp.pop %v1039
    %v1056 = vrcp.pop %v1040
    %v1057 = vrcp.pop %v1041
    %v1058 = vrcp.pop %v1042
    %v1059 = vrcp.pop %v1043
    %v1060 = vrcp.pop %v1044
    %v1061 = vrcp.pop %v1045
    %v1062 = vrcp.pop %v1046
    %v1063 = vrcp.pop %v1047
    %v1064 = vrcp.pop %v1048
    %v1065 = vrcp.pop %v1049
    %v1066 = vrcp.pop %v1050
    %v1067 = vrcp.pop %v1051
    %v1068 = vrcp.pop %v1052
    %v1069 = vrcp.pop %v1053
    %v1070 = vrcp.pop %v1054
    %1072 = vset.pattern.permute.xlu0 0
    %1073 = vperm.xlu0 %1072, %v1055
    %v1074 = vpop.permute.xlu0 %1073
    %1077 = vset.pattern.permute.xlu0 0
    %1078 = vperm.xlu0 %1077, %v1056
    %v1079 = vpop.permute.xlu0 %1078
    %1082 = vset.pattern.permute.xlu0 0
    %1083 = vperm.xlu0 %1082, %v1057
    %v1084 = vpop.permute.xlu0 %1083
    %1087 = vset.pattern.permute.xlu0 0
    %1088 = vperm.xlu0 %1087, %v1058
    %v1089 = vpop.permute.xlu0 %1088
    %1092 = vset.pattern.permute.xlu0 0
    %1093 = vperm.xlu0 %1092, %v1059
    %v1094 = vpop.permute.xlu0 %1093
    %1097 = vset.pattern.permute.xlu0 0
    %1098 = vperm.xlu0 %1097, %v1060
    %v1099 = vpop.permute.xlu0 %1098
    %1102 = vset.pattern.permute.xlu0 0
    %1103 = vperm.xlu0 %1102, %v1061
    %v1104 = vpop.permute.xlu0 %1103
    %1107 = vset.pattern.permute.xlu0 0
    %1108 = vperm.xlu0 %1107, %v1062
    %v1109 = vpop.permute.xlu0 %1108
    %1112 = vset.pattern.permute.xlu0 0
    %1113 = vperm.xlu0 %1112, %v1063
    %v1114 = vpop.permute.xlu0 %1113
    %1117 = vset.pattern.permute.xlu0 0
    %1118 = vperm.xlu0 %1117, %v1064
    %v1119 = vpop.permute.xlu0 %1118
    %1122 = vset.pattern.permute.xlu0 0
    %1123 = vperm.xlu0 %1122, %v1065
    %v1124 = vpop.permute.xlu0 %1123
    %1127 = vset.pattern.permute.xlu0 0
    %1128 = vperm.xlu0 %1127, %v1066
    %v1129 = vpop.permute.xlu0 %1128
    %1132 = vset.pattern.permute.xlu0 0
    %1133 = vperm.xlu0 %1132, %v1067
    %v1134 = vpop.permute.xlu0 %1133
    %1137 = vset.pattern.permute.xlu0 0
    %1138 = vperm.xlu0 %1137, %v1068
    %v1139 = vpop.permute.xlu0 %1138
    %1142 = vset.pattern.permute.xlu0 0
    %1143 = vperm.xlu0 %1142, %v1069
    %v1144 = vpop.permute.xlu0 %1143
    %1147 = vset.pattern.permute.xlu0 0
    %1148 = vperm.xlu0 %1147, %v1070
    %v1149 = vpop.permute.xlu0 %1148
    %v1151 = vmul.f32 %v984, %v1074
    %v1152 = vmul.f32 %v986, %v1079
    %v1153 = vmul.f32 %v989, %v1084
    %v1154 = vmul.f32 %v991, %v1089
    %v1155 = vmul.f32 %v994, %v1094
    %v1156 = vmul.f32 %v996, %v1099
    %v1157 = vmul.f32 %v999, %v1104
    %v1158 = vmul.f32 %v1001, %v1109
    %v1159 = vmul.f32 %v1004, %v1114
    %v1160 = vmul.f32 %v1006, %v1119
    %v1161 = vmul.f32 %v1009, %v1124
    %v1162 = vmul.f32 %v1011, %v1129
    %v1163 = vmul.f32 %v1014, %v1134
    %v1164 = vmul.f32 %v1016, %v1139
    %v1165 = vmul.f32 %v1019, %v1144
    %v1166 = vmul.f32 %v1021, %v1149
    %v1167 = vld [vmem:[%s3] sm:$0x1]
    %v1169 = vperm.slane %v1167, 0
    %v1171 = vadd.f32 %v1151, %v1169
    %v1172 = vadd.f32 %v1152, %v1169
    %v1173 = vadd.f32 %v1153, %v1169
    %v1174 = vadd.f32 %v1154, %v1169
    %v1175 = vadd.f32 %v1155, %v1169
    %v1176 = vadd.f32 %v1156, %v1169
    %v1177 = vadd.f32 %v1157, %v1169
    %v1178 = vadd.f32 %v1158, %v1169
    %v1179 = vadd.f32 %v1159, %v1169
    %v1180 = vadd.f32 %v1160, %v1169
    %v1181 = vadd.f32 %v1161, %v1169
    %v1182 = vadd.f32 %v1162, %v1169
    %v1183 = vadd.f32 %v1163, %v1169
    %v1184 = vadd.f32 %v1164, %v1169
    %v1185 = vadd.f32 %v1165, %v1169
    %v1186 = vadd.f32 %v1166, %v1169
    %v1187 = vmax.f32 %v1171, 0.0
    %v1188 = vmax.f32 %v1172, 0.0
    %v1189 = vmax.f32 %v1173, 0.0
    %v1190 = vmax.f32 %v1174, 0.0
    %v1191 = vmax.f32 %v1175, 0.0
    %v1192 = vmax.f32 %v1176, 0.0
    %v1193 = vmax.f32 %v1177, 0.0
    %v1194 = vmax.f32 %v1178, 0.0
    %v1195 = vmax.f32 %v1179, 0.0
    %v1196 = vmax.f32 %v1180, 0.0
    %v1197 = vmax.f32 %v1181, 0.0
    %v1198 = vmax.f32 %v1182, 0.0
    %v1199 = vmax.f32 %v1183, 0.0
    %v1200 = vmax.f32 %v1184, 0.0
    %v1201 = vmax.f32 %v1185, 0.0
    %v1202 = vmax.f32 %v1186, 0.0
    %v1203 = vld [vmem:[%s4] sm:$0x1]
    %v1205 = vperm.slane %v1203, 0
    %v1207 = vmul.f32 %v1187, %v1205
    %v1208 = vmul.f32 %v1188, %v1205
    %v1209 = vmul.f32 %v1189, %v1205
    %v1210 = vmul.f32 %v1190, %v1205
    %v1211 = vmul.f32 %v1191, %v1205
    %v1212 = vmul.f32 %v1192, %v1205
    %v1213 = vmul.f32 %v1193, %v1205
    %v1214 = vmul.f32 %v1194, %v1205
    %v1215 = vmul.f32 %v1195, %v1205
    %v1216 = vmul.f32 %v1196, %v1205
    %v1217 = vmul.f32 %v1197, %v1205
    %v1218 = vmul.f32 %v1198, %v1205
    %v1219 = vmul.f32 %v1199, %v1205
    %v1220 = vmul.f32 %v1200, %v1205
    %v1221 = vmul.f32 %v1201, %v1205
    %v1222 = vmul.f32 %v1202, %v1205
    %1223 = vadd.xlane.f32.xlu0 %v1207
    %v1224 = vpop.xlane.xlu0 %1223
    %1225 = vadd.xlane.f32.xlu0 %v1208
    %v1226 = vpop.xlane.xlu0 %1225
    %1227 = vadd.xlane.f32.xlu0 %v1209
    %v1228 = vpop.xlane.xlu0 %1227
    %1229 = vadd.xlane.f32.xlu0 %v1210
    %v1230 = vpop.xlane.xlu0 %1229
    %1231 = vadd.xlane.f32.xlu0 %v1211
    %v1232 = vpop.xlane.xlu0 %1231
    %1233 = vadd.xlane.f32.xlu0 %v1212
    %v1234 = vpop.xlane.xlu0 %1233
    %1235 = vadd.xlane.f32.xlu0 %v1213
    %v1236 = vpop.xlane.xlu0 %1235
    %1237 = vadd.xlane.f32.xlu0 %v1214
    %v1238 = vpop.xlane.xlu0 %1237
    %1239 = vadd.xlane.f32.xlu0 %v1215
    %v1240 = vpop.xlane.xlu0 %1239
    %1241 = vadd.xlane.f32.xlu0 %v1216
    %v1242 = vpop.xlane.xlu0 %1241
    %1243 = vadd.xlane.f32.xlu0 %v1217
    %v1244 = vpop.xlane.xlu0 %1243
    %1245 = vadd.xlane.f32.xlu0 %v1218
    %v1246 = vpop.xlane.xlu0 %1245
    %1247 = vadd.xlane.f32.xlu0 %v1219
    %v1248 = vpop.xlane.xlu0 %1247
    %1249 = vadd.xlane.f32.xlu0 %v1220
    %v1250 = vpop.xlane.xlu0 %1249
    %1251 = vadd.xlane.f32.xlu0 %v1221
    %v1252 = vpop.xlane.xlu0 %1251
    %1253 = vadd.xlane.f32.xlu0 %v1222
    %v1254 = vpop.xlane.xlu0 %1253
    %v1255 = vld [vmem:[#allocation2] sm:$0x1]
    %1257 = vset.pattern.permute.xlu0 0
    %1258 = vperm.xlu0 %1257, %v1255
    %v1259 = vpop.permute.xlu0 %1258
    %v1261 = vperm.slane %v1259, 0
    %v1262 = vadd.f32 %v1224, %v1261
    %v1263 = vadd.f32 %v1226, %v1261
    %v1264 = vadd.f32 %v1228, %v1261
    %v1265 = vadd.f32 %v1230, %v1261
    %v1266 = vadd.f32 %v1232, %v1261
    %v1267 = vadd.f32 %v1234, %v1261
    %v1268 = vadd.f32 %v1236, %v1261
    %v1269 = vadd.f32 %v1238, %v1261
    %v1270 = vadd.f32 %v1240, %v1261
    %v1271 = vadd.f32 %v1242, %v1261
    %v1272 = vadd.f32 %v1244, %v1261
    %v1273 = vadd.f32 %v1246, %v1261
    %v1274 = vadd.f32 %v1248, %v1261
    %v1275 = vadd.f32 %v1250, %v1261
    %v1276 = vadd.f32 %v1252, %v1261
    %v1277 = vadd.f32 %v1254, %v1261
    %v1294 = vperm.slane %v1262, %v44
    %v1295 = vadd.s32 %v44, 4294967288
    %v1296 = vperm.slane %v1263, %v1295
    %vm1297 = vcmask 130112
    %v1298 = vsel %vm1297, %v1296, %v1294
    %v1299 = vadd.s32 %v44, 4294967280
    %v1300 = vperm.slane %v1264, %v1299
    %vm1301 = vcmask 195712
    %v1302 = vsel %vm1301, %v1300, %v1298
    %v1303 = vadd.s32 %v44, 4294967272
    %v1304 = vperm.slane %v1265, %v1303
    %vm1305 = vcmask 261312
    %v1306 = vsel %vm1305, %v1304, %v1302
    %v1307 = vadd.s32 %v44, 4294967264
    %v1308 = vperm.slane %v1266, %v1307
    %vm1309 = vcmask 326912
    %v1310 = vsel %vm1309, %v1308, %v1306
    %v1311 = vadd.s32 %v44, 4294967256
    %v1312 = vperm.slane %v1267, %v1311
    %vm1313 = vcmask 392512
    %v1314 = vsel %vm1313, %v1312, %v1310
    %v1315 = vadd.s32 %v44, 4294967248
    %v1316 = vperm.slane %v1268, %v1315
    %vm1317 = vcmask 458112
    %v1318 = vsel %vm1317, %v1316, %v1314
    %v1319 = vadd.s32 %v44, 4294967240
    %v1320 = vperm.slane %v1269, %v1319
    %vm1321 = vcmask 523712
    %v1322 = vsel %vm1321, %v1320, %v1318
    %v1323 = vadd.s32 %v44, 4294967232
    %v1324 = vperm.slane %v1270, %v1323
    %vm1325 = vcmask 589312
    %v1326 = vsel %vm1325, %v1324, %v1322
    %v1327 = vadd.s32 %v44, 4294967224
    %v1328 = vperm.slane %v1271, %v1327
    %vm1329 = vcmask 654912
    %v1330 = vsel %vm1329, %v1328, %v1326
    %v1331 = vadd.s32 %v44, 4294967216
    %v1332 = vperm.slane %v1272, %v1331
    %vm1333 = vcmask 720512
    %v1334 = vsel %vm1333, %v1332, %v1330
    %v1335 = vadd.s32 %v44, 4294967208
    %v1336 = vperm.slane %v1273, %v1335
    %vm1337 = vcmask 786112
    %v1338 = vsel %vm1337, %v1336, %v1334
    %v1339 = vadd.s32 %v44, 4294967200
    %v1340 = vperm.slane %v1274, %v1339
    %vm1341 = vcmask 851712
    %v1342 = vsel %vm1341, %v1340, %v1338
    %v1343 = vadd.s32 %v44, 4294967192
    %v1344 = vperm.slane %v1275, %v1343
    %vm1345 = vcmask 917312
    %v1346 = vsel %vm1345, %v1344, %v1342
    %v1347 = vadd.s32 %v44, 4294967184
    %v1348 = vperm.slane %v1276, %v1347
    %vm1349 = vcmask 982912
    %v1350 = vsel %vm1349, %v1348, %v1346
    %v1351 = vadd.s32 %v44, 4294967176
    %v1352 = vperm.slane %v1277, %v1351
    %vm1353 = vcmask 1048512
    %v1354 = vsel %vm1353, %v1352, %v1350
    %1356 = vst [vmem:[#allocation3] sm:$0x1] %v1354
    // Predicated region
    $region26: #{tpu_custom_call.1} parent=1 // pred_check
      _
    $region27: #{tpu_custom_call.1} parent=1 // pred_check_branch
      %1358 = sbr.rel (0) target = $region29
    $region28: #{tpu_custom_call.1} parent=1 // pred_region
      %1360 = vsyncadd [#allocation4], 0
      %s1362 = sshll.u32 [#allocation3], 4
      %s1363 = int_to_ptr.vmem [resolvable:$true] %s1362
      %s1364 = sshll.u32 %s6, 4
      %s1365 = int_to_ptr.hbm [resolvable:$true] %s1364
      %1367 = dma.vmem_to_hbm [thread:$0]  %s1363, 16, %s1365, [#allocation4]
    $region29: #{tpu_custom_call.1} parent=1 // pred_fallthru
      _
    // Predicated region
    $region30: #{tpu_custom_call.1} parent=1 // pred_check
      _
    $region31: #{tpu_custom_call.1} parent=1 // pred_check_branch
      %1369 = sbr.rel (0) target = $region33
    $region32: #{tpu_custom_call.1} parent=1 // pred_region
      %1371 = dma.done [#allocation4], 16
    $region33: #{tpu_custom_call.1} parent=1 // pred_fallthru
      _
    %1372 = vsyncpa [#allocation4], 1

</llo_original>
